<compile_context>
chip_gen: v5e
topology: v5e:2x2
jax: 0.10.0
libtpu: 0.0.40
codegen_flags: <defaults>
</compile_context>

<pallas_src>
import math

import jax
import jax.numpy as jnp
from jax import lax
from jax.experimental import pallas as pl
from jax.experimental.pallas import tpu as pltpu

LANE = 128


def _round_up(n, m):
    return ((n + m - 1) // m) * m


# ----------------------------------------------------------------------------
# Single fused Pallas kernel (whole CDC forward, both encoders at once)
# ----------------------------------------------------------------------------

def cdc_fused_kernel(p_ref, wc_ref, pool_ref,
                     w1_ref, gamma_ref, beta_ref, w2_ref, b2_ref,
                     wfc_ref, bfc_ref,
                     z_ref, out_ref):
    """All operands live in VMEM; every last dim is a multiple of 128.

    p_ref   : (N*HW, Kp)   bf16 im2col patches (K zero-padded)
    wc_ref  : (Kp, C2p)    bf16 conv weights, [online | target] on lanes
    pool_ref: (N, N*HW)    f32 per-image mean-pool matrix (entries 1/HW)
    w1_ref  : (C2p, H2p)   block-diagonal projector Linear1 (no bias)
    gamma/beta: (1, H2p)   BN affine, [online | target], zero-padded
    w2_ref  : (H2p, Z2p)   block-diagonal projector Linear2
    b2_ref  : (1, Z2p)
    wfc_ref : (Z2p, NCp)   classifier; rows for target/pad columns are zero
    bfc_ref : (1, NCp)
    z_ref   : (N, Z2p)     packed [online z | target z | 0...]
    out_ref : (N, NCp)     padded classifier logits
    """
    # Backbone stem: 3x3 conv as one im2col GEMM (bf16 operands, f32 acc).
    feat = jnp.dot(p_ref[...], wc_ref[...],
                   preferred_element_type=jnp.float32)          # (N*HW, C2p)
    feat = jnp.maximum(feat, 0.0)                               # ReLU

    # Global average pool as a GEMM (rides the MXU, no cross-sublane reduce).
    feats = jnp.dot(pool_ref[...], feat,
                    preferred_element_type=jnp.float32)         # (N, C2p)

    # Projector Linear (no bias): both encoders in one block-diagonal GEMM.
    h = jnp.dot(feats, w1_ref[...],
                preferred_element_type=jnp.float32)             # (N, H2p)

    # BatchNorm1d (training batch stats), single pass: var = E[h^2] - mean^2.
    inv_n = 1.0 / h.shape[0]
    mean = jnp.sum(h, axis=0, keepdims=True) * inv_n
    meansq = jnp.sum(h * h, axis=0, keepdims=True) * inv_n
    var = jnp.maximum(meansq - mean * mean, 0.0)
    scale = gamma_ref[...] * lax.rsqrt(var + 1e-5)
    shift = beta_ref[...] - mean * scale
    hn = jnp.maximum(h * scale + shift, 0.0)                    # BN + ReLU

    # Projector Linear (+bias) -> packed (online | target) z.  Lane-dense store.
    z = jnp.dot(hn, w2_ref[...],
                preferred_element_type=jnp.float32) + b2_ref[...]
    z_ref[...] = z

    # Classifier on the online half (zero rows of wfc mask the target/pad cols).
    out_ref[...] = jnp.dot(z, wfc_ref[...],
                           preferred_element_type=jnp.float32) + bfc_ref[...]


# ----------------------------------------------------------------------------
# Host-side glue: im2col, weight packing, forward wrapper
# ----------------------------------------------------------------------------

def im2col_3x3(x):
    """x: (N, C, H, W) NCHW -> patches (N*H*W, C*9), pad=1, stride=1."""
    N, C, H, W = x.shape
    xp = jnp.pad(x, ((0, 0), (0, 0), (1, 1), (1, 1)))
    taps = [xp[:, :, dh:dh + H, dw:dw + W] for dh in range(3) for dw in range(3)]
    p = jnp.stack(taps, axis=-1)                                  # (N, C, H, W, 9)
    return p.transpose(0, 2, 3, 1, 4).reshape(N * H * W, C * 9)
    # TODO(synk): for real ResNet-scale inputs, generate the 9 taps inside the
    # kernel from one padded image tile (shifted slices / pltpu.roll) instead of
    # materializing a 9x-blown-up im2col tensor in HBM.


def pack_cdc_params(online, target, fc, *, in_ch, prev_dim, hidden_dim,
                    pred_dim, num_classes):
    """Concatenate online/target weights and zero-pad all lane dims to 128."""
    K = in_ch * 9
    Kp = _round_up(K, LANE)
    C2p = _round_up(2 * prev_dim, LANE)
    H2p = _round_up(2 * hidden_dim, LANE)
    Z2p = _round_up(2 * pred_dim, LANE)
    NCp = _round_up(num_classes, LANE)

    wc = jnp.zeros((Kp, C2p), jnp.float32)
    wc = wc.at[:K, :prev_dim].set(online["w_conv"])
    wc = wc.at[:K, prev_dim:2 * prev_dim].set(target["w_conv"])
    wc = wc.astype(jnp.bfloat16)

    w1 = jnp.zeros((C2p, H2p), jnp.float32)
    w1 = w1.at[:prev_dim, :hidden_dim].set(online["w1"])
    w1 = w1.at[prev_dim:2 * prev_dim, hidden_dim:2 * hidden_dim].set(target["w1"])

    gamma = jnp.zeros((1, H2p), jnp.float32)
    gamma = gamma.at[:, :hidden_dim].set(online["gamma"])
    gamma = gamma.at[:, hidden_dim:2 * hidden_dim].set(target["gamma"])
    beta = jnp.zeros((1, H2p), jnp.float32)
    beta = beta.at[:, :hidden_dim].set(online["beta"])
    beta = beta.at[:, hidden_dim:2 * hidden_dim].set(target["beta"])

    w2 = jnp.zeros((H2p, Z2p), jnp.float32)
    w2 = w2.at[:hidden_dim, :pred_dim].set(online["w2"])
    w2 = w2.at[hidden_dim:2 * hidden_dim, pred_dim:2 * pred_dim].set(target["w2"])
    b2 = jnp.zeros((1, Z2p), jnp.float32)
    b2 = b2.at[:, :pred_dim].set(online["b2"])
    b2 = b2.at[:, pred_dim:2 * pred_dim].set(target["b2"])

    wfc = jnp.zeros((Z2p, NCp), jnp.float32)
    wfc = wfc.at[:pred_dim, :num_classes].set(fc["w"])
    bfc = jnp.zeros((1, NCp), jnp.float32)
    bfc = bfc.at[:, :num_classes].set(fc["b"])

    return dict(wc=wc, w1=w1, gamma=gamma, beta=beta, w2=w2, b2=b2,
                wfc=wfc, bfc=bfc)


def cdc_forward(x, packed, pred_dim, num_classes):
    """Full CDC forward: returns (classifier output, target_z)."""
    N, C, H, W = x.shape
    HW = H * W
    K = C * 9
    Kp = packed["wc"].shape[0]
    Z2p = packed["w2"].shape[1]
    NCp = packed["wfc"].shape[1]

    patches = im2col_3x3(x)                                       # (N*HW, K)
    patches = jnp.pad(patches, ((0, 0), (0, Kp - K))).astype(jnp.bfloat16)

    # Per-image mean pooling expressed as a matrix so it runs on the MXU.
    pool = jnp.repeat(jnp.eye(N, dtype=jnp.float32), HW, axis=1) * (1.0 / HW)

    z_pack, out_pad = pl.pallas_call(
        cdc_fused_kernel,
        out_shape=(jax.ShapeDtypeStruct((N, Z2p), jnp.float32),
                   jax.ShapeDtypeStruct((N, NCp), jnp.float32)),
        compiler_params=pltpu.CompilerParams(vmem_limit_bytes=32 * 1024 * 1024),
    )(patches, packed["wc"], pool, packed["w1"], packed["gamma"],
      packed["beta"], packed["w2"], packed["b2"], packed["wfc"], packed["bfc"])

    output = out_pad[:, :num_classes]
    # torch.no_grad()/.detach() only affect autograd; forward values identical.
    target_z = z_pack[:, pred_dim:2 * pred_dim]
    return output, target_z


# ----------------------------------------------------------------------------
# Deterministic parameter construction (same as before)
# ----------------------------------------------------------------------------

def make_params(key, in_ch, prev_dim, hidden_dim, pred_dim, num_classes):
    k = jax.random.split(key, 6)
    K = in_ch * 9
    online = {
        # backbone stem (stand-in for the external base_encoder)
        "w_conv": jax.random.normal(k[0], (K, prev_dim), jnp.float32)
                  * (1.0 / math.sqrt(K)),
        # projector: Linear(prev_dim, hidden, bias=False)
        "w1": jax.random.normal(k[1], (prev_dim, hidden_dim), jnp.float32)
              * (1.0 / math.sqrt(prev_dim)),
        # BatchNorm1d(hidden) default init
        "gamma": jnp.ones((1, hidden_dim), jnp.float32),
        "beta": jnp.zeros((1, hidden_dim), jnp.float32),
        # Linear(hidden, pred_dim)
        "w2": jax.random.normal(k[2], (hidden_dim, pred_dim), jnp.float32)
              * (1.0 / math.sqrt(hidden_dim)),
        "b2": jax.random.normal(k[3], (1, pred_dim), jnp.float32) * 0.01,
    }
    # target_encoder = copy.deepcopy(online_encoder) -> identical weights
    target = {name: jnp.array(v) for name, v in online.items()}
    fc = {
        "w": jax.random.normal(k[4], (pred_dim, num_classes), jnp.float32)
             * (1.0 / math.sqrt(pred_dim)),
        "b": jax.random.normal(k[5], (1, num_classes), jnp.float32) * 0.01,
    }
    return online, target, fc


# ----------------------------------------------------------------------------
# Pure-JAX reference (same math, unfused) for a correctness cross-check
# ----------------------------------------------------------------------------

def cdc_reference(x, online, target, fc):
    N, C, H, W = x.shape

    def encoder(params):
        patches = im2col_3x3(x).astype(jnp.bfloat16)
        feat = jnp.dot(patches, params["w_conv"].astype(jnp.bfloat16),
                       preferred_element_type=jnp.float32)
        feat = jnp.maximum(feat, 0.0).reshape(N, H * W, -1)
        feats = jnp.mean(feat, axis=1)
        h = feats @ params["w1"]
        mean = jnp.mean(h, axis=0, keepdims=True)
        var = jnp.mean((h - mean) ** 2, axis=0, keepdims=True)
        hn = (h - mean) * lax.rsqrt(var + 1e-5) * params["gamma"] + params["beta"]
        hn = jnp.maximum(hn, 0.0)
        return hn @ params["w2"] + params["b2"]

    online_z = encoder(online)
    target_z = encoder(target)
    return online_z @ fc["w"] + fc["b"], target_z


# ----------------------------------------------------------------------------

if __name__ == "__main__":
    # Small shapes consistent with the module's forward.
    N, C, H, W = 2, 3, 16, 16
    prev_dim, hidden_dim, pred_dim, num_classes = 32, 32, 16, 10

    x = jax.random.normal(jax.random.PRNGKey(0), (N, C, H, W), jnp.float32)

    online_p, target_p, fc_p = make_params(
        jax.random.PRNGKey(42), C, prev_dim, hidden_dim, pred_dim, num_classes)

    packed = pack_cdc_params(online_p, target_p, fc_p, in_ch=C,
                             prev_dim=prev_dim, hidden_dim=hidden_dim,
                             pred_dim=pred_dim, num_classes=num_classes)

    fwd = jax.jit(cdc_forward, static_argnums=(2, 3))
    output, target_z = fwd(x, packed, pred_dim, num_classes)
    jax.block_until_ready((output, target_z))

    assert output.shape == (N, num_classes)
    assert target_z.shape == (N, pred_dim)
    assert bool(jnp.all(jnp.isfinite(output)))
    assert bool(jnp.all(jnp.isfinite(target_z)))

    ref_out, ref_tz = cdc_reference(x, online_p, target_p, fc_p)
    assert bool(jnp.allclose(output, ref_out, atol=2e-2, rtol=2e-2))
    assert bool(jnp.allclose(target_z, ref_tz, atol=2e-2, rtol=2e-2))

    print("KERNEL_OK")
</pallas_src>

<mosaic_0001>
module attributes {stable_mosaic.version = 11 : i64} {
  func.func @cdc_fused_kernel(%arg0: memref<512x128xbf16, #tpu.memory_space<vmem>>, %arg1: memref<128x128xbf16, #tpu.memory_space<vmem>>, %arg2: memref<2x512xf32, #tpu.memory_space<vmem>>, %arg3: memref<128x128xf32, #tpu.memory_space<vmem>>, %arg4: memref<1x128xf32, #tpu.memory_space<vmem>>, %arg5: memref<1x128xf32, #tpu.memory_space<vmem>>, %arg6: memref<128x128xf32, #tpu.memory_space<vmem>>, %arg7: memref<1x128xf32, #tpu.memory_space<vmem>>, %arg8: memref<128x128xf32, #tpu.memory_space<vmem>>, %arg9: memref<1x128xf32, #tpu.memory_space<vmem>>, %arg10: memref<2x128xf32, #tpu.memory_space<vmem>>, %arg11: memref<2x128xf32, #tpu.memory_space<vmem>>) attributes {dimension_semantics = [], scalar_prefetch = 0 : i64, scratch_operands = 0 : i64, tpu.core_type = #tpu.core_type<tc>} {
    %c0 = arith.constant 0 : index
    %c0_0 = arith.constant 0 : index
    %0 = vector.load %arg0[%c0, %c0_0] : memref<512x128xbf16, #tpu.memory_space<vmem>>, vector<512x128xbf16>
    %c0_1 = arith.constant 0 : index
    %c0_2 = arith.constant 0 : index
    %1 = vector.load %arg1[%c0_1, %c0_2] : memref<128x128xbf16, #tpu.memory_space<vmem>>, vector<128x128xbf16>
    %cst = arith.constant dense<0.000000e+00> : vector<512x128xf32>
    %2 = tpu.matmul %0, %1, %cst {dimension_numbers = #tpu.dot_dimension_numbers<[1], [0], [0], [1], [0, 0, 1, 1], [], []>} : vector<512x128xbf16>, vector<128x128xbf16>, vector<512x128xf32> -> vector<512x128xf32>
    %cst_3 = arith.constant 0.000000e+00 : f32
    %3 = vector.broadcast %cst_3 : f32 to vector<512x128xf32>
    %4 = arith.maximumf %2, %3 : vector<512x128xf32>
    %c0_4 = arith.constant 0 : index
    %c0_5 = arith.constant 0 : index
    %5 = vector.load %arg2[%c0_4, %c0_5] : memref<2x512xf32, #tpu.memory_space<vmem>>, vector<2x512xf32>
    %cst_6 = arith.constant dense<0.000000e+00> : vector<2x128xf32>
    %6 = tpu.matmul %5, %4, %cst_6 {dimension_numbers = #tpu.dot_dimension_numbers<[1], [0], [0], [1], [0, 0, 1, 1], [], []>} : vector<2x512xf32>, vector<512x128xf32>, vector<2x128xf32> -> vector<2x128xf32>
    %c0_7 = arith.constant 0 : index
    %c0_8 = arith.constant 0 : index
    %7 = vector.load %arg3[%c0_7, %c0_8] : memref<128x128xf32, #tpu.memory_space<vmem>>, vector<128x128xf32>
    %cst_9 = arith.constant dense<0.000000e+00> : vector<2x128xf32>
    %8 = tpu.matmul %6, %7, %cst_9 {dimension_numbers = #tpu.dot_dimension_numbers<[1], [0], [0], [1], [0, 0, 1, 1], [], []>} : vector<2x128xf32>, vector<128x128xf32>, vector<2x128xf32> -> vector<2x128xf32>
    %cst_10 = arith.constant dense<0.000000e+00> : vector<128xf32>
    %9 = vector.multi_reduction <add>, %8, %cst_10 [0] : vector<2x128xf32> to vector<128xf32>
    %10 = vector.shape_cast %9 : vector<128xf32> to vector<1x128xf32>
    %cst_11 = arith.constant 5.000000e-01 : f32
    %11 = vector.broadcast %cst_11 : f32 to vector<1x128xf32>
    %12 = arith.mulf %10, %11 : vector<1x128xf32>
    %13 = arith.mulf %8, %8 : vector<2x128xf32>
    %cst_12 = arith.constant dense<0.000000e+00> : vector<128xf32>
    %14 = vector.multi_reduction <add>, %13, %cst_12 [0] : vector<2x128xf32> to vector<128xf32>
    %15 = vector.shape_cast %14 : vector<128xf32> to vector<1x128xf32>
    %cst_13 = arith.constant 5.000000e-01 : f32
    %16 = vector.broadcast %cst_13 : f32 to vector<1x128xf32>
    %17 = arith.mulf %15, %16 : vector<1x128xf32>
    %18 = arith.mulf %12, %12 : vector<1x128xf32>
    %19 = arith.subf %17, %18 : vector<1x128xf32>
    %cst_14 = arith.constant 0.000000e+00 : f32
    %20 = vector.broadcast %cst_14 : f32 to vector<1x128xf32>
    %21 = arith.maximumf %19, %20 : vector<1x128xf32>
    %c0_15 = arith.constant 0 : index
    %c0_16 = arith.constant 0 : index
    %22 = vector.load %arg4[%c0_15, %c0_16] : memref<1x128xf32, #tpu.memory_space<vmem>>, vector<1x128xf32>
    %cst_17 = arith.constant 9.99999974E-6 : f32
    %23 = vector.broadcast %cst_17 : f32 to vector<1x128xf32>
    %24 = arith.addf %21, %23 : vector<1x128xf32>
    %25 = math.rsqrt %24 : vector<1x128xf32>
    %26 = arith.mulf %22, %25 : vector<1x128xf32>
    %c0_18 = arith.constant 0 : index
    %c0_19 = arith.constant 0 : index
    %27 = vector.load %arg5[%c0_18, %c0_19] : memref<1x128xf32, #tpu.memory_space<vmem>>, vector<1x128xf32>
    %28 = arith.mulf %12, %26 : vector<1x128xf32>
    %29 = arith.subf %27, %28 : vector<1x128xf32>
    %30 = vector.broadcast %26 : vector<1x128xf32> to vector<2x128xf32>
    %31 = arith.mulf %8, %30 : vector<2x128xf32>
    %32 = vector.broadcast %29 : vector<1x128xf32> to vector<2x128xf32>
    %33 = arith.addf %31, %32 : vector<2x128xf32>
    %cst_20 = arith.constant 0.000000e+00 : f32
    %34 = vector.broadcast %cst_20 : f32 to vector<2x128xf32>
    %35 = arith.maximumf %33, %34 : vector<2x128xf32>
    %c0_21 = arith.constant 0 : index
    %c0_22 = arith.constant 0 : index
    %36 = vector.load %arg6[%c0_21, %c0_22] : memref<128x128xf32, #tpu.memory_space<vmem>>, vector<128x128xf32>
    %cst_23 = arith.constant dense<0.000000e+00> : vector<2x128xf32>
    %37 = tpu.matmul %35, %36, %cst_23 {dimension_numbers = #tpu.dot_dimension_numbers<[1], [0], [0], [1], [0, 0, 1, 1], [], []>} : vector<2x128xf32>, vector<128x128xf32>, vector<2x128xf32> -> vector<2x128xf32>
    %c0_24 = arith.constant 0 : index
    %c0_25 = arith.constant 0 : index
    %38 = vector.load %arg7[%c0_24, %c0_25] : memref<1x128xf32, #tpu.memory_space<vmem>>, vector<1x128xf32>
    %39 = vector.broadcast %38 : vector<1x128xf32> to vector<2x128xf32>
    %40 = arith.addf %37, %39 : vector<2x128xf32>
    %c0_26 = arith.constant 0 : index
    %c0_27 = arith.constant 0 : index
    %41 = vector.load %arg10[%c0_26, %c0_27] : memref<2x128xf32, #tpu.memory_space<vmem>>, vector<2x128xf32>
    tpu.vector_store %arg10[%c0_26, %c0_27], %40 {strides = array<i32>} : memref<2x128xf32, #tpu.memory_space<vmem>>, vector<2x128xf32>,
    %c0_28 = arith.constant 0 : index
    %c0_29 = arith.constant 0 : index
    %42 = vector.load %arg8[%c0_28, %c0_29] : memref<128x128xf32, #tpu.memory_space<vmem>>, vector<128x128xf32>
    %cst_30 = arith.constant dense<0.000000e+00> : vector<2x128xf32>
    %43 = tpu.matmul %40, %42, %cst_30 {dimension_numbers = #tpu.dot_dimension_numbers<[1], [0], [0], [1], [0, 0, 1, 1], [], []>} : vector<2x128xf32>, vector<128x128xf32>, vector<2x128xf32> -> vector<2x128xf32>
    %c0_31 = arith.constant 0 : index
    %c0_32 = arith.constant 0 : index
    %44 = vector.load %arg9[%c0_31, %c0_32] : memref<1x128xf32, #tpu.memory_space<vmem>>, vector<1x128xf32>
    %45 = vector.broadcast %44 : vector<1x128xf32> to vector<2x128xf32>
    %46 = arith.addf %43, %45 : vector<2x128xf32>
    %c0_33 = arith.constant 0 : index
    %c0_34 = arith.constant 0 : index
    %47 = vector.load %arg11[%c0_33, %c0_34] : memref<2x128xf32, #tpu.memory_space<vmem>>, vector<2x128xf32>
    tpu.vector_store %arg11[%c0_33, %c0_34], %46 {strides = array<i32>} : memref<2x128xf32, #tpu.memory_space<vmem>>, vector<2x128xf32>,
    return
  }
}

</mosaic_0001>

<llo_original>
// kernel: cdc_forward.1
$region0: #{cdc_forward.1}
  #allocation0 [shape = 'u32[]', space=smem, size = 0x4, offset = 0x4, fixed_abs, tag = 'smem constant byte address 0x4 - core index']
  #allocation1 [shape = 'u32[72,128]{1,0:T(1,128)}', space=vmem, size = 0x9000, scoped, tag = 'internal scratch']
  %s0 = inlined_call_operand.vmem [shape: bf16[512,128], index: 0, kind: input, shape index: {}]
  %s1 = inlined_call_operand.vmem [shape: bf16[128,128], index: 1, kind: input, shape index: {}]
  %s2 = inlined_call_operand.vmem [shape: f32[2,512], index: 2, kind: input, shape index: {}]
  %s3 = inlined_call_operand.vmem [shape: f32[128,128], index: 3, kind: input, shape index: {}]
  %s4 = inlined_call_operand.vmem [shape: f32[1,128], index: 4, kind: input, shape index: {}]
  %s5 = inlined_call_operand.vmem [shape: f32[1,128], index: 5, kind: input, shape index: {}]
  %s6 = inlined_call_operand.vmem [shape: f32[128,128], index: 6, kind: input, shape index: {}]
  %s7 = inlined_call_operand.vmem [shape: f32[1,128], index: 7, kind: input, shape index: {}]
  %s8 = inlined_call_operand.vmem [shape: f32[128,128], index: 8, kind: input, shape index: {}]
  %s9 = inlined_call_operand.vmem [shape: f32[1,128], index: 9, kind: input, shape index: {}]
  %s10 = inlined_call_operand.vmem [shape: f32[2,128], index: 10, kind: output, shape index: {0}]
  %s11 = inlined_call_operand.hbm [shape: f32[2,128], index: 11, kind: output, shape index: {1}]
  %12 = xla_tuple %s10, %s11
  %s13 = sld [smem:[#allocation0]]
  $region58: #{cdc_forward.1} parent=0
    _
  %s15 = ssub.s32 1, %s13
  %s16 = scalar_select 0, %s15, %s13
  $region1: #{cdc_forward.1} parent=0
    #allocation2 [shape = 'u8[1024]{0}', space=vmem, size = 0x400, scoped, tag = 'output window, operand 1, single buffered']
    #allocation3 [shape = 's32[1]{0}', space=sflag, size = 0x4, scoped, tag = 'scoped memory for cdc_forward.1']
    %17 = vsyncpa [#allocation3], 0
    // Predicated region
    $region2: #{cdc_forward.1} parent=1 // pred_check
      _
    $region3: #{cdc_forward.1} parent=1 // pred_check_branch
      %19 = sbr.rel (0) target = $region5
    $region4: #{cdc_forward.1} parent=1 // pred_region
      _
    $region5: #{cdc_forward.1} parent=1 // pred_fallthru
      _
    // Predicated region
    $region6: #{cdc_forward.1} parent=1 // pred_check
      _
    $region7: #{cdc_forward.1} parent=1 // pred_check_branch
      %21 = sbr.rel (0) target = $region9
    $region8: #{cdc_forward.1} parent=1 // pred_region
      _
    $region9: #{cdc_forward.1} parent=1 // pred_fallthru
      _
    // Predicated region
    $region10: #{cdc_forward.1} parent=1 // pred_check
      _
    $region11: #{cdc_forward.1} parent=1 // pred_check_branch
      %23 = sbr.rel (0) target = $region13
    $region12: #{cdc_forward.1} parent=1 // pred_region
      _
    $region13: #{cdc_forward.1} parent=1 // pred_fallthru
      _
    // Predicated region
    $region14: #{cdc_forward.1} parent=1 // pred_check
      _
    $region15: #{cdc_forward.1} parent=1 // pred_check_branch
      %25 = sbr.rel (0) target = $region17
    $region16: #{cdc_forward.1} parent=1 // pred_region
      _
    $region17: #{cdc_forward.1} parent=1 // pred_fallthru
      _
    // Predicated region
    $region18: #{cdc_forward.1} parent=1 // pred_check
      _
    $region19: #{cdc_forward.1} parent=1 // pred_check_branch
      %27 = sbr.rel (0) target = $region21
    $region20: #{cdc_forward.1} parent=1 // pred_region
      _
    $region21: #{cdc_forward.1} parent=1 // pred_fallthru
      _
    // Predicated region
    $region22: #{cdc_forward.1} parent=1 // pred_check
      _
    $region23: #{cdc_forward.1} parent=1 // pred_check_branch
      %29 = sbr.rel (0) target = $region25
    $region24: #{cdc_forward.1} parent=1 // pred_region
      _
    $region25: #{cdc_forward.1} parent=1 // pred_fallthru
      _
    // Predicated region
    $region26: #{cdc_forward.1} parent=1 // pred_check
      _
    $region27: #{cdc_forward.1} parent=1 // pred_check_branch
      %31 = sbr.rel (0) target = $region29
    $region28: #{cdc_forward.1} parent=1 // pred_region
      _
    $region29: #{cdc_forward.1} parent=1 // pred_fallthru
      _
    // Predicated region
    $region30: #{cdc_forward.1} parent=1 // pred_check
      _
    $region31: #{cdc_forward.1} parent=1 // pred_check_branch
      %33 = sbr.rel (0) target = $region33
    $region32: #{cdc_forward.1} parent=1 // pred_region
      _
    $region33: #{cdc_forward.1} parent=1 // pred_fallthru
      _
    // Predicated region
    $region34: #{cdc_forward.1} parent=1 // pred_check
      _
    $region35: #{cdc_forward.1} parent=1 // pred_check_branch
      %35 = sbr.rel (0) target = $region37
    $region36: #{cdc_forward.1} parent=1 // pred_region
      _
    $region37: #{cdc_forward.1} parent=1 // pred_fallthru
      _
    // Predicated region
    $region38: #{cdc_forward.1} parent=1 // pred_check
      _
    $region39: #{cdc_forward.1} parent=1 // pred_check_branch
      %37 = sbr.rel (0) target = $region41
    $region40: #{cdc_forward.1} parent=1 // pred_region
      _
    $region41: #{cdc_forward.1} parent=1 // pred_fallthru
      _
    %v38 = vld [vmem:[%s0] sm:$0xf]
    %v39 = vld [vmem:[%s0 + $0x4] sm:$0xf]
    %v40 = vld [vmem:[%s0 + $0x8] sm:$0xf]
    %v41 = vld [vmem:[%s0 + $0xc] sm:$0xf]
    %v42 = vld [vmem:[%s0 + $0x10] sm:$0xf]
    %v43 = vld [vmem:[%s0 + $0x14] sm:$0xf]
    %v44 = vld [vmem:[%s0 + $0x18] sm:$0xf]
    %v45 = vld [vmem:[%s0 + $0x1c] sm:$0xf]
    %v46 = vld [vmem:[%s0 + $0x20] sm:$0xf]
    %v47 = vld [vmem:[%s0 + $0x24] sm:$0xf]
    %v48 = vld [vmem:[%s0 + $0x28] sm:$0xf]
    %v49 = vld [vmem:[%s0 + $0x2c] sm:$0xf]
    %v50 = vld [vmem:[%s0 + $0x30] sm:$0xf]
    %v51 = vld [vmem:[%s0 + $0x34] sm:$0xf]
    %v52 = vld [vmem:[%s0 + $0x38] sm:$0xf]
    %v53 = vld [vmem:[%s0 + $0x3c] sm:$0xf]
    %v54 = vld [vmem:[%s0 + $0x40] sm:$0xf]
    %v55 = vld [vmem:[%s0 + $0x44] sm:$0xf]
    %v56 = vld [vmem:[%s0 + $0x48] sm:$0xf]
    %v57 = vld [vmem:[%s0 + $0x4c] sm:$0xf]
    %v58 = vld [vmem:[%s0 + $0x50] sm:$0xf]
    %v59 = vld [vmem:[%s0 + $0x54] sm:$0xf]
    %v60 = vld [vmem:[%s0 + $0x58] sm:$0xf]
    %v61 = vld [vmem:[%s0 + $0x5c] sm:$0xf]
    %v62 = vld [vmem:[%s0 + $0x60] sm:$0xf]
    %v63 = vld [vmem:[%s0 + $0x64] sm:$0xf]
    %v64 = vld [vmem:[%s0 + $0x68] sm:$0xf]
    %v65 = vld [vmem:[%s0 + $0x6c] sm:$0xf]
    %v66 = vld [vmem:[%s0 + $0x70] sm:$0xf]
    %v67 = vld [vmem:[%s0 + $0x74] sm:$0xf]
    %v68 = vld [vmem:[%s0 + $0x78] sm:$0xf]
    %v69 = vld [vmem:[%s0 + $0x7c] sm:$0xf]
    %v70 = vld [vmem:[%s0 + $0x80] sm:$0xf]
    %v71 = vld [vmem:[%s0 + $0x84] sm:$0xf]
    %v72 = vld [vmem:[%s0 + $0x88] sm:$0xf]
    %v73 = vld [vmem:[%s0 + $0x8c] sm:$0xf]
    %v74 = vld [vmem:[%s0 + $0x90] sm:$0xf]
    %v75 = vld [vmem:[%s0 + $0x94] sm:$0xf]
    %v76 = vld [vmem:[%s0 + $0x98] sm:$0xf]
    %v77 = vld [vmem:[%s0 + $0x9c] sm:$0xf]
    %v78 = vld [vmem:[%s0 + $0xa0] sm:$0xf]
    %v79 = vld [vmem:[%s0 + $0xa4] sm:$0xf]
    %v80 = vld [vmem:[%s0 + $0xa8] sm:$0xf]
    %v81 = vld [vmem:[%s0 + $0xac] sm:$0xf]
    %v82 = vld [vmem:[%s0 + $0xb0] sm:$0xf]
    %v83 = vld [vmem:[%s0 + $0xb4] sm:$0xf]
    %v84 = vld [vmem:[%s0 + $0xb8] sm:$0xf]
    %v85 = vld [vmem:[%s0 + $0xbc] sm:$0xf]
    %v86 = vld [vmem:[%s0 + $0xc0] sm:$0xf]
    %v87 = vld [vmem:[%s0 + $0xc4] sm:$0xf]
    %v88 = vld [vmem:[%s0 + $0xc8] sm:$0xf]
    %v89 = vld [vmem:[%s0 + $0xcc] sm:$0xf]
    %v90 = vld [vmem:[%s0 + $0xd0] sm:$0xf]
    %v91 = vld [vmem:[%s0 + $0xd4] sm:$0xf]
    %v92 = vld [vmem:[%s0 + $0xd8] sm:$0xf]
    %v93 = vld [vmem:[%s0 + $0xdc] sm:$0xf]
    %v94 = vld [vmem:[%s0 + $0xe0] sm:$0xf]
    %v95 = vld [vmem:[%s0 + $0xe4] sm:$0xf]
    %v96 = vld [vmem:[%s0 + $0xe8] sm:$0xf]
    %v97 = vld [vmem:[%s0 + $0xec] sm:$0xf]
    %v98 = vld [vmem:[%s0 + $0xf0] sm:$0xf]
    %v99 = vld [vmem:[%s0 + $0xf4] sm:$0xf]
    %v100 = vld [vmem:[%s0 + $0xf8] sm:$0xf]
    %v101 = vld [vmem:[%s0 + $0xfc] sm:$0xf]
    %v102 = vld [vmem:[%s1] sm:$0xf]
    %v103 = vld [vmem:[%s1 + $0x4] sm:$0xf]
    %v104 = vld [vmem:[%s1 + $0x8] sm:$0xf]
    %v105 = vld [vmem:[%s1 + $0xc] sm:$0xf]
    %v106 = vld [vmem:[%s1 + $0x10] sm:$0xf]
    %v107 = vld [vmem:[%s1 + $0x14] sm:$0xf]
    %v108 = vld [vmem:[%s1 + $0x18] sm:$0xf]
    %v109 = vld [vmem:[%s1 + $0x1c] sm:$0xf]
    %v110 = vld [vmem:[%s1 + $0x20] sm:$0xf]
    %v111 = vld [vmem:[%s1 + $0x24] sm:$0xf]
    %v112 = vld [vmem:[%s1 + $0x28] sm:$0xf]
    %v113 = vld [vmem:[%s1 + $0x2c] sm:$0xf]
    %v114 = vld [vmem:[%s1 + $0x30] sm:$0xf]
    %v115 = vld [vmem:[%s1 + $0x34] sm:$0xf]
    %v116 = vld [vmem:[%s1 + $0x38] sm:$0xf]
    %v117 = vld [vmem:[%s1 + $0x3c] sm:$0xf]
    %v182 = vunpack.c.l.b16 %v38
    %v183 = vunpack.c.l.b16 %v39
    %v184 = vunpack.c.l.b16 %v40
    %v185 = vunpack.c.l.b16 %v41
    %v186 = vunpack.c.l.b16 %v42
    %v187 = vunpack.c.l.b16 %v43
    %v188 = vunpack.c.l.b16 %v44
    %v189 = vunpack.c.l.b16 %v45
    %v190 = vunpack.c.l.b16 %v46
    %v191 = vunpack.c.l.b16 %v47
    %v192 = vunpack.c.l.b16 %v48
    %v193 = vunpack.c.l.b16 %v49
    %v194 = vunpack.c.l.b16 %v50
    %v195 = vunpack.c.l.b16 %v51
    %v196 = vunpack.c.l.b16 %v52
    %v197 = vunpack.c.l.b16 %v53
    %v198 = vunpack.c.l.b16 %v54
    %v199 = vunpack.c.l.b16 %v55
    %v200 = vunpack.c.l.b16 %v56
    %v201 = vunpack.c.l.b16 %v57
    %v202 = vunpack.c.l.b16 %v58
    %v203 = vunpack.c.l.b16 %v59
    %v204 = vunpack.c.l.b16 %v60
    %v205 = vunpack.c.l.b16 %v61
    %v206 = vunpack.c.l.b16 %v62
    %v207 = vunpack.c.l.b16 %v63
    %v208 = vunpack.c.l.b16 %v64
    %v209 = vunpack.c.l.b16 %v65
    %v210 = vunpack.c.l.b16 %v66
    %v211 = vunpack.c.l.b16 %v67
    %v212 = vunpack.c.l.b16 %v68
    %v213 = vunpack.c.l.b16 %v69
    %v214 = vunpack.c.l.b16 %v70
    %v215 = vunpack.c.l.b16 %v71
    %v216 = vunpack.c.l.b16 %v72
    %v217 = vunpack.c.l.b16 %v73
    %v218 = vunpack.c.l.b16 %v74
    %v219 = vunpack.c.l.b16 %v75
    %v220 = vunpack.c.l.b16 %v76
    %v221 = vunpack.c.l.b16 %v77
    %v222 = vunpack.c.l.b16 %v78
    %v223 = vunpack.c.l.b16 %v79
    %v224 = vunpack.c.l.b16 %v80
    %v225 = vunpack.c.l.b16 %v81
    %v226 = vunpack.c.l.b16 %v82
    %v227 = vunpack.c.l.b16 %v83
    %v228 = vunpack.c.l.b16 %v84
    %v229 = vunpack.c.l.b16 %v85
    %v230 = vunpack.c.l.b16 %v86
    %v231 = vunpack.c.l.b16 %v87
    %v232 = vunpack.c.l.b16 %v88
    %v233 = vunpack.c.l.b16 %v89
    %v234 = vunpack.c.l.b16 %v90
    %v235 = vunpack.c.l.b16 %v91
    %v236 = vunpack.c.l.b16 %v92
    %v237 = vunpack.c.l.b16 %v93
    %v238 = vunpack.c.l.b16 %v94
    %v239 = vunpack.c.l.b16 %v95
    %v240 = vunpack.c.l.b16 %v96
    %v241 = vunpack.c.l.b16 %v97
    %v242 = vunpack.c.l.b16 %v98
    %v243 = vunpack.c.l.b16 %v99
    %v244 = vunpack.c.l.b16 %v100
    %v245 = vunpack.c.l.b16 %v101
    %v246 = vpack.c.b16 %v183, %v182
    %v247 = vpack.c.b16 %v185, %v184
    %v248 = vpack.c.b16 %v187, %v186
    %v249 = vpack.c.b16 %v189, %v188
    %v250 = vpack.c.b16 %v191, %v190
    %v251 = vpack.c.b16 %v193, %v192
    %v252 = vpack.c.b16 %v195, %v194
    %v253 = vpack.c.b16 %v197, %v196
    %v254 = vpack.c.b16 %v199, %v198
    %v255 = vpack.c.b16 %v201, %v200
    %v256 = vpack.c.b16 %v203, %v202
    %v257 = vpack.c.b16 %v205, %v204
    %v258 = vpack.c.b16 %v207, %v206
    %v259 = vpack.c.b16 %v209, %v208
    %v260 = vpack.c.b16 %v211, %v210
    %v261 = vpack.c.b16 %v213, %v212
    %v262 = vpack.c.b16 %v215, %v214
    %v263 = vpack.c.b16 %v217, %v216
    %v264 = vpack.c.b16 %v219, %v218
    %v265 = vpack.c.b16 %v221, %v220
    %v266 = vpack.c.b16 %v223, %v222
    %v267 = vpack.c.b16 %v225, %v224
    %v268 = vpack.c.b16 %v227, %v226
    %v269 = vpack.c.b16 %v229, %v228
    %v270 = vpack.c.b16 %v231, %v230
    %v271 = vpack.c.b16 %v233, %v232
    %v272 = vpack.c.b16 %v235, %v234
    %v273 = vpack.c.b16 %v237, %v236
    %v274 = vpack.c.b16 %v239, %v238
    %v275 = vpack.c.b16 %v241, %v240
    %v276 = vpack.c.b16 %v243, %v242
    %v277 = vpack.c.b16 %v245, %v244
    %v326 = vunpack.c.l.b16 %v102
    %v327 = vunpack.c.l.b16 %v103
    %v328 = vunpack.c.l.b16 %v104
    %v329 = vunpack.c.l.b16 %v105
    %v330 = vunpack.c.l.b16 %v106
    %v331 = vunpack.c.l.b16 %v107
    %v332 = vunpack.c.l.b16 %v108
    %v333 = vunpack.c.l.b16 %v109
    %v334 = vunpack.c.l.b16 %v110
    %v335 = vunpack.c.l.b16 %v111
    %v336 = vunpack.c.l.b16 %v112
    %v337 = vunpack.c.l.b16 %v113
    %v338 = vunpack.c.l.b16 %v114
    %v339 = vunpack.c.l.b16 %v115
    %v340 = vunpack.c.l.b16 %v116
    %v341 = vunpack.c.l.b16 %v117
    %v342 = vpack.c.b16 %v327, %v326
    %v343 = vpack.c.b16 %v329, %v328
    %v344 = vpack.c.b16 %v331, %v330
    %v345 = vpack.c.b16 %v333, %v332
    %v346 = vpack.c.b16 %v335, %v334
    %v347 = vpack.c.b16 %v337, %v336
    %v348 = vpack.c.b16 %v339, %v338
    %v349 = vpack.c.b16 %v341, %v340
    %358 = vmatpush.bf16.msra.mxu0 %v349
    %359 = vmatpush.bf16.msra.mxu0 %v348
    %360 = vmatpush.bf16.msra.mxu0 %v347
    %361 = vmatpush.bf16.msra.mxu0 %v346
    %362 = vmatpush.bf16.msra.mxu0 %v345
    %363 = vmatpush.bf16.msra.mxu0 %v344
    %364 = vmatpush.bf16.msra.mxu0 %v343
    %365 = vmatpush.bf16.msra.mxu0 %v342
    %366 = vmatmul.bf16.gmra.mxu0 %v246
    %v367 = vpop.f32.mrf.mxu0
    %v368 = vadd.f32 0.0, %v367
    %v369 = vpop.f32.mrf.mxu0
    %v370 = vadd.f32 0.0, %v369
    %371 = vmatmul.bf16.gmra.mxu0 %v247
    %v372 = vpop.f32.mrf.mxu0
    %v373 = vadd.f32 0.0, %v372
    %v374 = vpop.f32.mrf.mxu0
    %v375 = vadd.f32 0.0, %v374
    %376 = vmatmul.bf16.gmra.mxu0 %v248
    %v377 = vpop.f32.mrf.mxu0
    %v378 = vadd.f32 0.0, %v377
    %v379 = vpop.f32.mrf.mxu0
    %v380 = vadd.f32 0.0, %v379
    %381 = vmatmul.bf16.gmra.mxu0 %v249
    %v382 = vpop.f32.mrf.mxu0
    %v383 = vadd.f32 0.0, %v382
    %v384 = vpop.f32.mrf.mxu0
    %v385 = vadd.f32 0.0, %v384
    %386 = vmatmul.bf16.gmra.mxu0 %v250
    %v387 = vpop.f32.mrf.mxu0
    %v388 = vadd.f32 0.0, %v387
    %v389 = vpop.f32.mrf.mxu0
    %v390 = vadd.f32 0.0, %v389
    %391 = vmatmul.bf16.gmra.mxu0 %v251
    %v392 = vpop.f32.mrf.mxu0
    %v393 = vadd.f32 0.0, %v392
    %v394 = vpop.f32.mrf.mxu0
    %v395 = vadd.f32 0.0, %v394
    %396 = vmatmul.bf16.gmra.mxu0 %v252
    %v397 = vpop.f32.mrf.mxu0
    %v398 = vadd.f32 0.0, %v397
    %v399 = vpop.f32.mrf.mxu0
    %v400 = vadd.f32 0.0, %v399
    %401 = vmatmul.bf16.gmra.mxu0 %v253
    %v402 = vpop.f32.mrf.mxu0
    %v403 = vadd.f32 0.0, %v402
    %v404 = vpop.f32.mrf.mxu0
    %v405 = vadd.f32 0.0, %v404
    %406 = vmatmul.bf16.gmra.mxu0 %v254
    %v407 = vpop.f32.mrf.mxu0
    %v408 = vadd.f32 0.0, %v407
    %v409 = vpop.f32.mrf.mxu0
    %v410 = vadd.f32 0.0, %v409
    %411 = vmatmul.bf16.gmra.mxu0 %v255
    %v412 = vpop.f32.mrf.mxu0
    %v413 = vadd.f32 0.0, %v412
    %v414 = vpop.f32.mrf.mxu0
    %v415 = vadd.f32 0.0, %v414
    %416 = vmatmul.bf16.gmra.mxu0 %v256
    %v417 = vpop.f32.mrf.mxu0
    %v418 = vadd.f32 0.0, %v417
    %v419 = vpop.f32.mrf.mxu0
    %v420 = vadd.f32 0.0, %v419
    %421 = vmatmul.bf16.gmra.mxu0 %v257
    %v422 = vpop.f32.mrf.mxu0
    %v423 = vadd.f32 0.0, %v422
    %v424 = vpop.f32.mrf.mxu0
    %v425 = vadd.f32 0.0, %v424
    %426 = vmatmul.bf16.gmra.mxu0 %v258
    %v427 = vpop.f32.mrf.mxu0
    %v428 = vadd.f32 0.0, %v427
    %v429 = vpop.f32.mrf.mxu0
    %v430 = vadd.f32 0.0, %v429
    %431 = vmatmul.bf16.gmra.mxu0 %v259
    %v432 = vpop.f32.mrf.mxu0
    %v433 = vadd.f32 0.0, %v432
    %v434 = vpop.f32.mrf.mxu0
    %v435 = vadd.f32 0.0, %v434
    %436 = vmatmul.bf16.gmra.mxu0 %v260
    %v437 = vpop.f32.mrf.mxu0
    %v438 = vadd.f32 0.0, %v437
    %v439 = vpop.f32.mrf.mxu0
    %v440 = vadd.f32 0.0, %v439
    %441 = vmatmul.bf16.gmra.mxu0 %v261
    %v442 = vpop.f32.mrf.mxu0
    %v443 = vadd.f32 0.0, %v442
    %v444 = vpop.f32.mrf.mxu0
    %v445 = vadd.f32 0.0, %v444
    %446 = vmatmul.bf16.gmra.mxu0 %v262
    %v447 = vpop.f32.mrf.mxu0
    %v448 = vadd.f32 0.0, %v447
    %v449 = vpop.f32.mrf.mxu0
    %v450 = vadd.f32 0.0, %v449
    %451 = vmatmul.bf16.gmra.mxu0 %v263
    %v452 = vpop.f32.mrf.mxu0
    %v453 = vadd.f32 0.0, %v452
    %v454 = vpop.f32.mrf.mxu0
    %v455 = vadd.f32 0.0, %v454
    %456 = vmatmul.bf16.gmra.mxu0 %v264
    %v457 = vpop.f32.mrf.mxu0
    %v458 = vadd.f32 0.0, %v457
    %v459 = vpop.f32.mrf.mxu0
    %v460 = vadd.f32 0.0, %v459
    %461 = vmatmul.bf16.gmra.mxu0 %v265
    %v462 = vpop.f32.mrf.mxu0
    %v463 = vadd.f32 0.0, %v462
    %v464 = vpop.f32.mrf.mxu0
    %v465 = vadd.f32 0.0, %v464
    %466 = vmatmul.bf16.gmra.mxu0 %v266
    %v467 = vpop.f32.mrf.mxu0
    %v468 = vadd.f32 0.0, %v467
    %v469 = vpop.f32.mrf.mxu0
    %v470 = vadd.f32 0.0, %v469
    %471 = vmatmul.bf16.gmra.mxu0 %v267
    %v472 = vpop.f32.mrf.mxu0
    %v473 = vadd.f32 0.0, %v472
    %v474 = vpop.f32.mrf.mxu0
    %v475 = vadd.f32 0.0, %v474
    %476 = vmatmul.bf16.gmra.mxu0 %v268
    %v477 = vpop.f32.mrf.mxu0
    %v478 = vadd.f32 0.0, %v477
    %v479 = vpop.f32.mrf.mxu0
    %v480 = vadd.f32 0.0, %v479
    %481 = vmatmul.bf16.gmra.mxu0 %v269
    %v482 = vpop.f32.mrf.mxu0
    %v483 = vadd.f32 0.0, %v482
    %v484 = vpop.f32.mrf.mxu0
    %v485 = vadd.f32 0.0, %v484
    %486 = vmatmul.bf16.gmra.mxu0 %v270
    %v487 = vpop.f32.mrf.mxu0
    %v488 = vadd.f32 0.0, %v487
    %v489 = vpop.f32.mrf.mxu0
    %v490 = vadd.f32 0.0, %v489
    %491 = vmatmul.bf16.gmra.mxu0 %v271
    %v492 = vpop.f32.mrf.mxu0
    %v493 = vadd.f32 0.0, %v492
    %v494 = vpop.f32.mrf.mxu0
    %v495 = vadd.f32 0.0, %v494
    %496 = vmatmul.bf16.gmra.mxu0 %v272
    %v497 = vpop.f32.mrf.mxu0
    %v498 = vadd.f32 0.0, %v497
    %v499 = vpop.f32.mrf.mxu0
    %v500 = vadd.f32 0.0, %v499
    %501 = vmatmul.bf16.gmra.mxu0 %v273
    %v502 = vpop.f32.mrf.mxu0
    %v503 = vadd.f32 0.0, %v502
    %v504 = vpop.f32.mrf.mxu0
    %v505 = vadd.f32 0.0, %v504
    %506 = vmatmul.bf16.gmra.mxu0 %v274
    %v507 = vpop.f32.mrf.mxu0
    %v508 = vadd.f32 0.0, %v507
    %v509 = vpop.f32.mrf.mxu0
    %v510 = vadd.f32 0.0, %v509
    %511 = vmatmul.bf16.gmra.mxu0 %v275
    %v512 = vpop.f32.mrf.mxu0
    %v513 = vadd.f32 0.0, %v512
    %v514 = vpop.f32.mrf.mxu0
    %v515 = vadd.f32 0.0, %v514
    %516 = vmatmul.bf16.gmra.mxu0 %v276
    %v517 = vpop.f32.mrf.mxu0
    %v518 = vadd.f32 0.0, %v517
    %v519 = vpop.f32.mrf.mxu0
    %v520 = vadd.f32 0.0, %v519
    %521 = vmatmul.bf16.gmra.mxu0 %v277
    %v522 = vpop.f32.mrf.mxu0
    %v523 = vadd.f32 0.0, %v522
    %v524 = vpop.f32.mrf.mxu0
    %v525 = vadd.f32 0.0, %v524
    %526 = vdwg.mxu0
    %v527 = vmax.f32 %v368, 0.0
    %v528 = vmax.f32 %v370, 0.0
    %v529 = vmax.f32 %v373, 0.0
    %v530 = vmax.f32 %v375, 0.0
    %v531 = vmax.f32 %v378, 0.0
    %v532 = vmax.f32 %v380, 0.0
    %v533 = vmax.f32 %v383, 0.0
    %v534 = vmax.f32 %v385, 0.0
    %v535 = vmax.f32 %v388, 0.0
    %v536 = vmax.f32 %v390, 0.0
    %v537 = vmax.f32 %v393, 0.0
    %v538 = vmax.f32 %v395, 0.0
    %v539 = vmax.f32 %v398, 0.0
    %v540 = vmax.f32 %v400, 0.0
    %v541 = vmax.f32 %v403, 0.0
    %v542 = vmax.f32 %v405, 0.0
    %v543 = vmax.f32 %v408, 0.0
    %v544 = vmax.f32 %v410, 0.0
    %v545 = vmax.f32 %v413, 0.0
    %v546 = vmax.f32 %v415, 0.0
    %v547 = vmax.f32 %v418, 0.0
    %v548 = vmax.f32 %v420, 0.0
    %v549 = vmax.f32 %v423, 0.0
    %v550 = vmax.f32 %v425, 0.0
    %v551 = vmax.f32 %v428, 0.0
    %v552 = vmax.f32 %v430, 0.0
    %v553 = vmax.f32 %v433, 0.0
    %v554 = vmax.f32 %v435, 0.0
    %v555 = vmax.f32 %v438, 0.0
    %v556 = vmax.f32 %v440, 0.0
    %v557 = vmax.f32 %v443, 0.0
    %v558 = vmax.f32 %v445, 0.0
    %v559 = vmax.f32 %v448, 0.0
    %v560 = vmax.f32 %v450, 0.0
    %v561 = vmax.f32 %v453, 0.0
    %v562 = vmax.f32 %v455, 0.0
    %v563 = vmax.f32 %v458, 0.0
    %v564 = vmax.f32 %v460, 0.0
    %v565 = vmax.f32 %v463, 0.0
    %v566 = vmax.f32 %v465, 0.0
    %v567 = vmax.f32 %v468, 0.0
    %v568 = vmax.f32 %v470, 0.0
    %v569 = vmax.f32 %v473, 0.0
    %v570 = vmax.f32 %v475, 0.0
    %v571 = vmax.f32 %v478, 0.0
    %v572 = vmax.f32 %v480, 0.0
    %v573 = vmax.f32 %v483, 0.0
    %v574 = vmax.f32 %v485, 0.0
    %v575 = vmax.f32 %v488, 0.0
    %v576 = vmax.f32 %v490, 0.0
    %v577 = vmax.f32 %v493, 0.0
    %v578 = vmax.f32 %v495, 0.0
    %v579 = vmax.f32 %v498, 0.0
    %v580 = vmax.f32 %v500, 0.0
    %v581 = vmax.f32 %v503, 0.0
    %v582 = vmax.f32 %v505, 0.0
    %v583 = vmax.f32 %v508, 0.0
    %v584 = vmax.f32 %v510, 0.0
    %v585 = vmax.f32 %v513, 0.0
    %v586 = vmax.f32 %v515, 0.0
    %v587 = vmax.f32 %v518, 0.0
    %v588 = vmax.f32 %v520, 0.0
    %v589 = vmax.f32 %v523, 0.0
    %v590 = vmax.f32 %v525, 0.0
    %v591 = vld [vmem:[%s2] sm:$0xff]
    %593 = vst [vmem:[#allocation1] ss:$4 sm:$0xff] %v591
    %v594 = vld.sshfl [vmem:[#allocation1] sm:$0xff pattern:$0x73625140]
    %v595 = vld.sshfl [vmem:[#allocation1 + $0x8] sm:$0xff pattern:$0x73625140]
    %v596 = vld.sshfl [vmem:[#allocation1 + $0x10] sm:$0xff pattern:$0x73625140]
    %v597 = vld.sshfl [vmem:[#allocation1 + $0x18] sm:$0xff pattern:$0x73625140]
    %602 = vmatpush.msra.mxu0 %v542
    %603 = vmatpush.msra.mxu0 %v541
    %604 = vmatpush.msra.mxu0 %v540
    %605 = vmatpush.msra.mxu0 %v539
    %606 = vmatpush.msra.mxu0 %v538
    %607 = vmatpush.msra.mxu0 %v537
    %608 = vmatpush.msra.mxu0 %v536
    %609 = vmatpush.msra.mxu0 %v535
    %610 = vmatpush.msra.mxu0 %v534
    %611 = vmatpush.msra.mxu0 %v533
    %612 = vmatpush.msra.mxu0 %v532
    %613 = vmatpush.msra.mxu0 %v531
    %614 = vmatpush.msra.mxu0 %v530
    %615 = vmatpush.msra.mxu0 %v529
    %616 = vmatpush.msra.mxu0 %v528
    %617 = vmatpush.msra.mxu0 %v527
    %618 = vmatmul.f32.gmra.mxu0 %v594
    %v619 = vpop.f32.mrf.mxu0
    %v620 = vadd.f32 0.0, %v619
    %621 = vdwg.mxu0
    %622 = vmatpush.msra.mxu0 %v558
    %623 = vmatpush.msra.mxu0 %v557
    %624 = vmatpush.msra.mxu0 %v556
    %625 = vmatpush.msra.mxu0 %v555
    %626 = vmatpush.msra.mxu0 %v554
    %627 = vmatpush.msra.mxu0 %v553
    %628 = vmatpush.msra.mxu0 %v552
    %629 = vmatpush.msra.mxu0 %v551
    %630 = vmatpush.msra.mxu0 %v550
    %631 = vmatpush.msra.mxu0 %v549
    %632 = vmatpush.msra.mxu0 %v548
    %633 = vmatpush.msra.mxu0 %v547
    %634 = vmatpush.msra.mxu0 %v546
    %635 = vmatpush.msra.mxu0 %v545
    %636 = vmatpush.msra.mxu0 %v544
    %637 = vmatpush.msra.mxu0 %v543
    %638 = vmatmul.f32.gmra.mxu0 %v595
    %v639 = vpop.f32.mrf.mxu0
    %v640 = vadd.f32 %v620, %v639
    %641 = vdwg.mxu0
    %642 = vmatpush.msra.mxu0 %v574
    %643 = vmatpush.msra.mxu0 %v573
    %644 = vmatpush.msra.mxu0 %v572
    %645 = vmatpush.msra.mxu0 %v571
    %646 = vmatpush.msra.mxu0 %v570
    %647 = vmatpush.msra.mxu0 %v569
    %648 = vmatpush.msra.mxu0 %v568
    %649 = vmatpush.msra.mxu0 %v567
    %650 = vmatpush.msra.mxu0 %v566
    %651 = vmatpush.msra.mxu0 %v565
    %652 = vmatpush.msra.mxu0 %v564
    %653 = vmatpush.msra.mxu0 %v563
    %654 = vmatpush.msra.mxu0 %v562
    %655 = vmatpush.msra.mxu0 %v561
    %656 = vmatpush.msra.mxu0 %v560
    %657 = vmatpush.msra.mxu0 %v559
    %658 = vmatmul.f32.gmra.mxu0 %v596
    %v659 = vpop.f32.mrf.mxu0
    %v660 = vadd.f32 %v640, %v659
    %661 = vdwg.mxu0
    %662 = vmatpush.msra.mxu0 %v590
    %663 = vmatpush.msra.mxu0 %v589
    %664 = vmatpush.msra.mxu0 %v588
    %665 = vmatpush.msra.mxu0 %v587
    %666 = vmatpush.msra.mxu0 %v586
    %667 = vmatpush.msra.mxu0 %v585
    %668 = vmatpush.msra.mxu0 %v584
    %669 = vmatpush.msra.mxu0 %v583
    %670 = vmatpush.msra.mxu0 %v582
    %671 = vmatpush.msra.mxu0 %v581
    %672 = vmatpush.msra.mxu0 %v580
    %673 = vmatpush.msra.mxu0 %v579
    %674 = vmatpush.msra.mxu0 %v578
    %675 = vmatpush.msra.mxu0 %v577
    %676 = vmatpush.msra.mxu0 %v576
    %677 = vmatpush.msra.mxu0 %v575
    %678 = vmatmul.f32.gmra.mxu0 %v597
    %v679 = vpop.f32.mrf.mxu0
    %v680 = vadd.f32 %v660, %v679
    %681 = vdwg.mxu0
    %v682 = vld [vmem:[%s3] sm:$0xff]
    %v683 = vld [vmem:[%s3 + $0x8] sm:$0xff]
    %v684 = vld [vmem:[%s3 + $0x10] sm:$0xff]
    %v685 = vld [vmem:[%s3 + $0x18] sm:$0xff]
    %v686 = vld [vmem:[%s3 + $0x20] sm:$0xff]
    %v687 = vld [vmem:[%s3 + $0x28] sm:$0xff]
    %v688 = vld [vmem:[%s3 + $0x30] sm:$0xff]
    %v689 = vld [vmem:[%s3 + $0x38] sm:$0xff]
    %v690 = vld [vmem:[%s3 + $0x40] sm:$0xff]
    %v691 = vld [vmem:[%s3 + $0x48] sm:$0xff]
    %v692 = vld [vmem:[%s3 + $0x50] sm:$0xff]
    %v693 = vld [vmem:[%s3 + $0x58] sm:$0xff]
    %v694 = vld [vmem:[%s3 + $0x60] sm:$0xff]
    %v695 = vld [vmem:[%s3 + $0x68] sm:$0xff]
    %v696 = vld [vmem:[%s3 + $0x70] sm:$0xff]
    %v697 = vld [vmem:[%s3 + $0x78] sm:$0xff]
    %698 = vmatpush.msra.mxu0 %v697
    %699 = vmatpush.msra.mxu0 %v696
    %700 = vmatpush.msra.mxu0 %v695
    %701 = vmatpush.msra.mxu0 %v694
    %702 = vmatpush.msra.mxu0 %v693
    %703 = vmatpush.msra.mxu0 %v692
    %704 = vmatpush.msra.mxu0 %v691
    %705 = vmatpush.msra.mxu0 %v690
    %706 = vmatpush.msra.mxu0 %v689
    %707 = vmatpush.msra.mxu0 %v688
    %708 = vmatpush.msra.mxu0 %v687
    %709 = vmatpush.msra.mxu0 %v686
    %710 = vmatpush.msra.mxu0 %v685
    %711 = vmatpush.msra.mxu0 %v684
    %712 = vmatpush.msra.mxu0 %v683
    %713 = vmatpush.msra.mxu0 %v682
    %714 = vmatmul.f32.gmra.mxu0 %v680
    %v715 = vpop.f32.mrf.mxu0
    %v716 = vadd.f32 0.0, %v715
    %717 = vdwg.mxu0
    %vm718 = vcmask 1041408
    %v719 = vsel %vm718, %v716, 0.0
    %v720 = vrot.slane %v719, 4
    %v721 = vadd.f32 %v719, %v720
    %v722 = vrot.slane %v721, 2
    %v723 = vadd.f32 %v721, %v722
    %v724 = vrot.slane %v723, 1
    %v725 = vadd.f32 %v723, %v724
    %v726 = vmul.f32 %v725, 0.5
    %v727 = vmul.f32 %v716, %v716
    %v728 = vsel %vm718, %v727, 0.0
    %v729 = vrot.slane %v728, 4
    %v730 = vadd.f32 %v728, %v729
    %v731 = vrot.slane %v730, 2
    %v732 = vadd.f32 %v730, %v731
    %v733 = vrot.slane %v732, 1
    %v734 = vadd.f32 %v732, %v733
    %v735 = vmul.f32 %v734, 0.5
    %v736 = vmul.f32 %v726, %v726
    %v737 = vsub.f32 %v735, %v736
    %v738 = vmax.f32 %v737, 0.0
    %v739 = vld [vmem:[%s4] sm:$0x1]
    %v740 = vadd.f32 %v738, 1e-05
    %v741 = vrsqrt.pop %v740
    %v742 = vmul.f32 %v741, %v740
    %v743 = vmul.f32 %v742, %v741
    %v744 = vmul.f32 0.5, %v743
    %v745 = vsub.f32 1.5, %v744
    %v746 = vmul.f32 %v741, %v745
    %vm747 = vweird.f32 %v740
    %vm748 = vweird.f32 %v741
    %vm749 = vmor %vm747, %vm748
    %v750 = vsel %vm749, %v741, %v746
    %v751 = vmul.f32 %v739, %v750
    %v752 = vld [vmem:[%s5] sm:$0x1]
    %v753 = vmul.f32 %v726, %v751
    %v754 = vsub.f32 %v752, %v753
    %v756 = vperm.slane %v751, 0
    %v758 = vmul.f32 %v716, %v756
    %v760 = vperm.slane %v754, 0
    %v762 = vadd.f32 %v758, %v760
    %v763 = vmax.f32 %v762, 0.0
    %v764 = vld [vmem:[%s6] sm:$0xff]
    %v765 = vld [vmem:[%s6 + $0x8] sm:$0xff]
    %v766 = vld [vmem:[%s6 + $0x10] sm:$0xff]
    %v767 = vld [vmem:[%s6 + $0x18] sm:$0xff]
    %v768 = vld [vmem:[%s6 + $0x20] sm:$0xff]
    %v769 = vld [vmem:[%s6 + $0x28] sm:$0xff]
    %v770 = vld [vmem:[%s6 + $0x30] sm:$0xff]
    %v771 = vld [vmem:[%s6 + $0x38] sm:$0xff]
    %v772 = vld [vmem:[%s6 + $0x40] sm:$0xff]
    %v773 = vld [vmem:[%s6 + $0x48] sm:$0xff]
    %v774 = vld [vmem:[%s6 + $0x50] sm:$0xff]
    %v775 = vld [vmem:[%s6 + $0x58] sm:$0xff]
    %v776 = vld [vmem:[%s6 + $0x60] sm:$0xff]
    %v777 = vld [vmem:[%s6 + $0x68] sm:$0xff]
    %v778 = vld [vmem:[%s6 + $0x70] sm:$0xff]
    %v779 = vld [vmem:[%s6 + $0x78] sm:$0xff]
    %v780 = vld [vmem:[%s7] sm:$0x1]
    %v782 = vperm.slane %v780, 0
    %784 = vmatpush.msra.mxu0 %v779
    %785 = vmatpush.msra.mxu0 %v778
    %786 = vmatpush.msra.mxu0 %v777
    %787 = vmatpush.msra.mxu0 %v776
    %788 = vmatpush.msra.mxu0 %v775
    %789 = vmatpush.msra.mxu0 %v774
    %790 = vmatpush.msra.mxu0 %v773
    %791 = vmatpush.msra.mxu0 %v772
    %792 = vmatpush.msra.mxu0 %v771
    %793 = vmatpush.msra.mxu0 %v770
    %794 = vmatpush.msra.mxu0 %v769
    %795 = vmatpush.msra.mxu0 %v768
    %796 = vmatpush.msra.mxu0 %v767
    %797 = vmatpush.msra.mxu0 %v766
    %798 = vmatpush.msra.mxu0 %v765
    %799 = vmatpush.msra.mxu0 %v764
    %800 = vmatmul.f32.gmra.mxu0 %v763
    %v801 = vpop.f32.mrf.mxu0
    %v802 = vadd.f32 %v782, %v801
    %803 = vdwg.mxu0
    %804 = vst [vmem:[%s10] sm:$0x3] %v802
    %v805 = vld [vmem:[%s8] sm:$0xff]
    %v806 = vld [vmem:[%s8 + $0x8] sm:$0xff]
    %v807 = vld [vmem:[%s8 + $0x10] sm:$0xff]
    %v808 = vld [vmem:[%s8 + $0x18] sm:$0xff]
    %v809 = vld [vmem:[%s8 + $0x20] sm:$0xff]
    %v810 = vld [vmem:[%s8 + $0x28] sm:$0xff]
    %v811 = vld [vmem:[%s8 + $0x30] sm:$0xff]
    %v812 = vld [vmem:[%s8 + $0x38] sm:$0xff]
    %v813 = vld [vmem:[%s8 + $0x40] sm:$0xff]
    %v814 = vld [vmem:[%s8 + $0x48] sm:$0xff]
    %v815 = vld [vmem:[%s8 + $0x50] sm:$0xff]
    %v816 = vld [vmem:[%s8 + $0x58] sm:$0xff]
    %v817 = vld [vmem:[%s8 + $0x60] sm:$0xff]
    %v818 = vld [vmem:[%s8 + $0x68] sm:$0xff]
    %v819 = vld [vmem:[%s8 + $0x70] sm:$0xff]
    %v820 = vld [vmem:[%s8 + $0x78] sm:$0xff]
    %v821 = vld [vmem:[%s9] sm:$0x1]
    %v823 = vperm.slane %v821, 0
    %825 = vmatpush.msra.mxu0 %v820
    %826 = vmatpush.msra.mxu0 %v819
    %827 = vmatpush.msra.mxu0 %v818
    %828 = vmatpush.msra.mxu0 %v817
    %829 = vmatpush.msra.mxu0 %v816
    %830 = vmatpush.msra.mxu0 %v815
    %831 = vmatpush.msra.mxu0 %v814
    %832 = vmatpush.msra.mxu0 %v813
    %833 = vmatpush.msra.mxu0 %v812
    %834 = vmatpush.msra.mxu0 %v811
    %835 = vmatpush.msra.mxu0 %v810
    %836 = vmatpush.msra.mxu0 %v809
    %837 = vmatpush.msra.mxu0 %v808
    %838 = vmatpush.msra.mxu0 %v807
    %839 = vmatpush.msra.mxu0 %v806
    %840 = vmatpush.msra.mxu0 %v805
    %841 = vmatmul.f32.gmra.mxu0 %v802
    %v842 = vpop.f32.mrf.mxu0
    %v843 = vadd.f32 %v823, %v842
    %844 = vdwg.mxu0
    %845 = vst [vmem:[#allocation2] sm:$0x3] %v843
    // Predicated region
    $region42: #{cdc_forward.1} parent=1 // pred_check
      _
    $region43: #{cdc_forward.1} parent=1 // pred_check_branch
      %847 = sbr.rel (0) target = $region45
    $region44: #{cdc_forward.1} parent=1 // pred_region
      _
    $region45: #{cdc_forward.1} parent=1 // pred_fallthru
      _
    // Predicated region
    $region46: #{cdc_forward.1} parent=1 // pred_check
      _
    $region47: #{cdc_forward.1} parent=1 // pred_check_branch
      %849 = sbr.rel (0) target = $region49
    $region48: #{cdc_forward.1} parent=1 // pred_region
      %851 = vsyncadd [#allocation3], 0
      %s853 = sshll.u32 [#allocation2], 4
      %s854 = int_to_ptr.vmem [resolvable:$true] %s853
      %s855 = sshll.u32 %s11, 4
      %s856 = int_to_ptr.hbm [resolvable:$true] %s855
      %858 = dma.vmem_to_hbm [thread:$0]  %s854, 32, %s856, [#allocation3]
    $region49: #{cdc_forward.1} parent=1 // pred_fallthru
      _
    // Predicated region
    $region50: #{cdc_forward.1} parent=1 // pred_check
      _
    $region51: #{cdc_forward.1} parent=1 // pred_check_branch
      %860 = sbr.rel (0) target = $region53
    $region52: #{cdc_forward.1} parent=1 // pred_region
      _
    $region53: #{cdc_forward.1} parent=1 // pred_fallthru
      _
    // Predicated region
    $region54: #{cdc_forward.1} parent=1 // pred_check
      _
    $region55: #{cdc_forward.1} parent=1 // pred_check_branch
      %862 = sbr.rel (0) target = $region57
    $region56: #{cdc_forward.1} parent=1 // pred_region
      %864 = dma.done [#allocation3], 32
    $region57: #{cdc_forward.1} parent=1 // pred_fallthru
      _
    %865 = vsyncpa [#allocation3], 1

</llo_original>
